<compile_context>
chip_gen: v7x
topology: tpu7x:2x2x1
jax: 0.10.0
libtpu: 0.0.40
codegen_flags: <defaults>
</compile_context>

<pallas_src>
import functools

import jax
import jax.numpy as jnp
from jax.experimental import pallas as pl
from jax.experimental.pallas import tpu as pltpu


def _round_up(n, m):
    return ((n + m - 1) // m) * m


def elm_kernel(x_ref, w1_ref, b_ref, w2_ref, o_ref):
    # First matmul on the MXU (bf16 inputs, f32 accumulation).
    h = jnp.dot(x_ref[...], w1_ref[...], preferred_element_type=jnp.float32)
    # Bias add + sigmoid in f32 ((tm, H) + (1, H) broadcast); sigmoid -> EUP.
    h = jax.nn.sigmoid(h + b_ref[...])
    # Second matmul on the MXU; cast the activation to the weight dtype.
    out = jnp.dot(h.astype(w2_ref.dtype), w2_ref[...],
                  preferred_element_type=jnp.float32)
    o_ref[...] = out.astype(o_ref.dtype)


@functools.partial(jax.jit, static_argnames=("tm",))
def elm_forward(x, hidden_weights, hidden_biases, output_weights, *, tm=256):
    """Pallas ELM forward. x: (B, I), returns (B, O)."""
    B, I = x.shape
    Ih, H = hidden_weights.shape
    Hh, O = output_weights.shape
    assert I == Ih and H == Hh

    out_dtype = x.dtype
    compute_dtype = jnp.bfloat16

    # ---- Layout plumbing (wrapper side) -----------------------------------
    # Lane-dense output: pad O up to a multiple of 128 with zero weight cols.
    O_pad = _round_up(O, 128)
    w2 = output_weights.astype(compute_dtype)
    if O_pad != O:
        w2 = jnp.pad(w2, ((0, 0), (0, O_pad - O)))

    # Row tile: big enough to feed the MXU, multiple of 16 (bf16 sublane),
    # clamped so tiny batches collapse to a single grid step.
    tm_eff = min(_round_up(tm, 16), _round_up(B, 16))
    B_pad = _round_up(B, tm_eff)

    x_c = x.astype(compute_dtype)
    if B_pad != B:
        x_c = jnp.pad(x_c, ((0, B_pad - B), (0, 0)))

    w1 = hidden_weights.astype(compute_dtype)
    b2d = hidden_biases.reshape(1, H).astype(jnp.float32)

    # ---- VMEM budget -------------------------------------------------------
    resident = (I * H * 2            # w1 (bf16)
                + H * O_pad * 2      # w2 (bf16, padded)
                + H * 4)             # bias (f32)
    per_step = (2 * tm_eff * I * 2           # double-buffered x tile (bf16)
                + 2 * tm_eff * O_pad * 4     # double-buffered out tile (f32)
                + 2 * tm_eff * H * 4)        # f32 hidden intermediate (+copy)
    vmem_limit = int(min(max(2 * (resident + per_step), 32 * 1024 * 1024),
                         100 * 1024 * 1024))

    cost = pl.CostEstimate(
        flops=2 * B_pad * (I * H + H * O_pad),
        transcendentals=B_pad * H,
        bytes_accessed=(B_pad * I * 2 + I * H * 2 + H * O_pad * 2
                        + H * 4 + B_pad * O_pad * 4),
    )

    out_padded = pl.pallas_call(
        elm_kernel,
        out_shape=jax.ShapeDtypeStruct((B_pad, O_pad), out_dtype),
        grid_spec=pltpu.PrefetchScalarGridSpec(
            num_scalar_prefetch=0,
            grid=(B_pad // tm_eff,),
            in_specs=[
                pl.BlockSpec((tm_eff, I), lambda i: (i, 0)),   # x row-tile
                pl.BlockSpec((I, H), lambda i: (0, 0)),        # W1 (resident)
                pl.BlockSpec((1, H), lambda i: (0, 0)),        # bias (f32)
                pl.BlockSpec((H, O_pad), lambda i: (0, 0)),    # W2 (resident)
            ],
            out_specs=pl.BlockSpec((tm_eff, O_pad), lambda i: (i, 0)),
        ),
        compiler_params=pltpu.CompilerParams(
            dimension_semantics=("parallel",),
            vmem_limit_bytes=vmem_limit,
        ),
        cost_estimate=cost,
    )(x_c, w1, b2d, w2)

    # Strip batch / output-column padding.
    return out_padded[:B, :O]


def elm_reference(x, hidden_weights, hidden_biases, output_weights):
    """Reference in the same mixed precision as the kernel (bf16 matmuls, f32 acc)."""
    cd = jnp.bfloat16
    h = jnp.dot(x.astype(cd), hidden_weights.astype(cd),
                preferred_element_type=jnp.float32)
    h = jax.nn.sigmoid(h + hidden_biases.astype(jnp.float32))
    out = jnp.dot(h.astype(cd), output_weights.astype(cd),
                  preferred_element_type=jnp.float32)
    return out.astype(x.dtype)


if __name__ == "__main__":
    # Small shapes consistent with the module's forward: x (B, input_size).
    B, INPUT, HIDDEN, OUTPUT = 16, 32, 64, 16

    key = jax.random.PRNGKey(0)
    kx, kw1, kb1, kw2 = jax.random.split(key, 4)

    x = jax.random.normal(kx, (B, INPUT), dtype=jnp.float32)
    # Deterministic synthetic parameters (matches torch.randn shapes in __init__).
    hidden_weights = jax.random.normal(kw1, (INPUT, HIDDEN), dtype=jnp.float32)
    hidden_biases = jax.random.normal(kb1, (HIDDEN,), dtype=jnp.float32)
    # output_weights is None in __init__ (solved analytically in ELM training);
    # initialize it deterministically here so the forward pass is runnable.
    output_weights = jax.random.normal(kw2, (HIDDEN, OUTPUT), dtype=jnp.float32)

    out = elm_forward(x, hidden_weights, hidden_biases, output_weights)
    out = jax.block_until_ready(out)

    ref = elm_reference(x, hidden_weights, hidden_biases, output_weights)
    ref_f32 = jax.nn.sigmoid(x @ hidden_weights + hidden_biases) @ output_weights

    assert out.shape == (B, OUTPUT)
    assert jnp.allclose(out, ref, atol=1e-2, rtol=1e-2), "mismatch vs bf16 reference"
    assert jnp.allclose(out, ref_f32, atol=1e-1, rtol=1e-1), "mismatch vs f32 reference"

    print("KERNEL_OK")
</pallas_src>

<mosaic_0001>
module attributes {stable_mosaic.version = 11 : i64} {
  func.func @elm_kernel(%arg0: i32, %arg1: memref<16x32xbf16, #tpu.memory_space<vmem>>, %arg2: memref<32x64xbf16, #tpu.memory_space<vmem>>, %arg3: memref<1x64xf32, #tpu.memory_space<vmem>>, %arg4: memref<64x128xbf16, #tpu.memory_space<vmem>>, %arg5: memref<16x128xf32, #tpu.memory_space<vmem>>) attributes {dimension_semantics = [#tpu.dimension_semantics<parallel>], iteration_bounds = array<i64: 1>, scalar_prefetch = 0 : i64, scratch_operands = 0 : i64, tpu.core_type = #tpu.core_type<tc>, window_params = [{transform_indices = @transform_0, window_bounds = array<i64: 16, 32>}, {pipeline_mode = #tpu.pipeline_mode<synchronous>, transform_indices = @transform_1, window_bounds = array<i64: 32, 64>}, {pipeline_mode = #tpu.pipeline_mode<synchronous>, transform_indices = @transform_2, window_bounds = array<i64: 1, 64>}, {pipeline_mode = #tpu.pipeline_mode<synchronous>, transform_indices = @transform_3, window_bounds = array<i64: 64, 128>}, {transform_indices = @transform_4, window_bounds = array<i64: 16, 128>}]} {
    %c0 = arith.constant 0 : index
    %c0_0 = arith.constant 0 : index
    %0 = vector.load %arg1[%c0, %c0_0] : memref<16x32xbf16, #tpu.memory_space<vmem>>, vector<16x32xbf16>
    %c0_1 = arith.constant 0 : index
    %c0_2 = arith.constant 0 : index
    %1 = vector.load %arg2[%c0_1, %c0_2] : memref<32x64xbf16, #tpu.memory_space<vmem>>, vector<32x64xbf16>
    %cst = arith.constant dense<0.000000e+00> : vector<16x64xf32>
    %2 = tpu.matmul %0, %1, %cst {dimension_numbers = #tpu.dot_dimension_numbers<[1], [0], [0], [1], [0, 0, 1, 1], [], []>} : vector<16x32xbf16>, vector<32x64xbf16>, vector<16x64xf32> -> vector<16x64xf32>
    %c0_3 = arith.constant 0 : index
    %c0_4 = arith.constant 0 : index
    %3 = vector.load %arg3[%c0_3, %c0_4] : memref<1x64xf32, #tpu.memory_space<vmem>>, vector<1x64xf32>
    %4 = vector.broadcast %3 : vector<1x64xf32> to vector<16x64xf32>
    %5 = arith.addf %2, %4 : vector<16x64xf32>
    %6 = arith.negf %5 : vector<16x64xf32>
    %7 = math.exp %6 : vector<16x64xf32>
    %cst_5 = arith.constant 1.000000e+00 : f32
    %8 = vector.broadcast %cst_5 : f32 to vector<16x64xf32>
    %9 = arith.addf %8, %7 : vector<16x64xf32>
    %10 = arith.divf %8, %9 : vector<16x64xf32>
    %11 = arith.truncf %10 : vector<16x64xf32> to vector<16x64xbf16>
    %c0_6 = arith.constant 0 : index
    %c0_7 = arith.constant 0 : index
    %12 = vector.load %arg4[%c0_6, %c0_7] : memref<64x128xbf16, #tpu.memory_space<vmem>>, vector<64x128xbf16>
    %cst_8 = arith.constant dense<0.000000e+00> : vector<16x128xf32>
    %13 = tpu.matmul %11, %12, %cst_8 {dimension_numbers = #tpu.dot_dimension_numbers<[1], [0], [0], [1], [0, 0, 1, 1], [], []>} : vector<16x64xbf16>, vector<64x128xbf16>, vector<16x128xf32> -> vector<16x128xf32>
    %c0_9 = arith.constant 0 : index
    %c0_10 = arith.constant 0 : index
    %14 = vector.load %arg5[%c0_9, %c0_10] : memref<16x128xf32, #tpu.memory_space<vmem>>, vector<16x128xf32>
    tpu.vector_store %arg5[%c0_9, %c0_10], %13 {strides = array<i32>} : memref<16x128xf32, #tpu.memory_space<vmem>>, vector<16x128xf32>,
    return
  }
  func.func @transform_0(%arg0: i32) -> (i32, i32) {
    %c0_i32 = arith.constant 0 : i32
    %c0_i32_0 = arith.constant 0 : i32
    return %arg0, %c0_i32 : i32, i32
  }
  func.func @transform_1(%arg0: i32) -> (i32, i32) {
    %c0_i32 = arith.constant 0 : i32
    %c0_i32_0 = arith.constant 0 : i32
    %c0_i32_1 = arith.constant 0 : i32
    return %c0_i32, %c0_i32_0 : i32, i32
  }
  func.func @transform_2(%arg0: i32) -> (i32, i32) {
    %c0_i32 = arith.constant 0 : i32
    %c0_i32_0 = arith.constant 0 : i32
    %c0_i32_1 = arith.constant 0 : i32
    return %c0_i32, %c0_i32_0 : i32, i32
  }
  func.func @transform_3(%arg0: i32) -> (i32, i32) {
    %c0_i32 = arith.constant 0 : i32
    %c0_i32_0 = arith.constant 0 : i32
    %c0_i32_1 = arith.constant 0 : i32
    return %c0_i32, %c0_i32_0 : i32, i32
  }
  func.func @transform_4(%arg0: i32) -> (i32, i32) {
    %c0_i32 = arith.constant 0 : i32
    %c0_i32_0 = arith.constant 0 : i32
    return %arg0, %c0_i32 : i32, i32
  }
}

</mosaic_0001>

<llo_original>
// kernel: elm_forward.1
$region0: #{elm_forward.1}
  #allocation0 [shape = 'u32[]', space=smem, size = 0x4, offset = 0x4, fixed_abs, tag = 'smem constant byte address 0x4 - core index']
  #allocation1 [shape = 'u32[144,128]{1,0:T(1,128)}', space=vmem, size = 0x12000, scoped, tag = 'internal scratch']
  %s0 = inlined_call_operand.vmem [shape: bf16[16,32], index: 0, kind: input, shape index: {}]
  %s1 = inlined_call_operand.vmem [shape: bf16[32,64], index: 1, kind: input, shape index: {}]
  %s2 = inlined_call_operand.vmem [shape: f32[1,64], index: 2, kind: input, shape index: {}]
  %s3 = inlined_call_operand.vmem [shape: bf16[64,128], index: 3, kind: input, shape index: {}]
  %s4 = inlined_call_operand.hbm [shape: f32[16,128], index: 4, kind: output, shape index: {}]
  %s5 = sld [smem:[#allocation0]]
  $region26: #{elm_forward.1} parent=0
    _
  %s7 = ssub.s32 1, %s5
  %s8 = scalar_select 0, %s7, %s5
  $region1: #{elm_forward.1} parent=0
    #allocation2 [shape = 'u8[8192]{0}', space=vmem, size = 0x2000, scoped, tag = 'output window, operand 0, single buffered']
    #allocation3 [shape = 's32[1]{0}', space=sflag, size = 0x4, scoped, tag = 'scoped memory for elm_forward.1']
    %9 = vsyncpa [#allocation3], 0
    // Predicated region
    $region2: #{elm_forward.1} parent=1 // pred_check
      _
    $region3: #{elm_forward.1} parent=1 // pred_check_branch
      %11 = sbr.rel (0) target = $region5
    $region4: #{elm_forward.1} parent=1 // pred_region
      _
    $region5: #{elm_forward.1} parent=1 // pred_fallthru
      _
    // Predicated region
    $region6: #{elm_forward.1} parent=1 // pred_check
      _
    $region7: #{elm_forward.1} parent=1 // pred_check_branch
      %13 = sbr.rel (0) target = $region9
    $region8: #{elm_forward.1} parent=1 // pred_region
      _
    $region9: #{elm_forward.1} parent=1 // pred_fallthru
      _
    // Predicated region
    $region10: #{elm_forward.1} parent=1 // pred_check
      _
    $region11: #{elm_forward.1} parent=1 // pred_check_branch
      %15 = sbr.rel (0) target = $region13
    $region12: #{elm_forward.1} parent=1 // pred_region
      _
    $region13: #{elm_forward.1} parent=1 // pred_fallthru
      _
    // Predicated region
    $region14: #{elm_forward.1} parent=1 // pred_check
      _
    $region15: #{elm_forward.1} parent=1 // pred_check_branch
      %17 = sbr.rel (0) target = $region17
    $region16: #{elm_forward.1} parent=1 // pred_region
      _
    $region17: #{elm_forward.1} parent=1 // pred_fallthru
      _
    %v19 = vld [vmem:[%s0] sm:$0xf]
    %v20 = vld [vmem:[%s0 + $0x4] sm:$0xf]
    %v21 = vld [vmem:[%s1] sm:$0xf]
    %v22 = vld [vmem:[%s1 + $0x4] sm:$0xf]
    %v23 = vld [vmem:[%s1 + $0x8] sm:$0xf]
    %v24 = vld [vmem:[%s1 + $0xc] sm:$0xf]
    %v25 = vld [vmem:[%s2] sm:$0x1]
    %v27 = vlaneseq
    %v28 = vshrl.u32 %v27, 7
    %v29 = vsub.s32 0, %v28
    %v30 = vrot.slane %v25, %v29
    %v34 = vunpack.c.l.b16 %v19
    %v35 = vunpack.c.l.b16 %v20
    %v36 = vpack.c.b16 %v35, %v34
    %v41 = vunpack.c.l.b16 %v21
    %v42 = vunpack.c.l.b16 %v22
    %v43 = vunpack.c.l.b16 %v23
    %v44 = vunpack.c.l.b16 %v24
    %v45 = vpack.c.b16 %v42, %v41
    %v46 = vpack.c.b16 %v44, %v43
    %vm49 = vcmask 261120
    %v51 = vsel %vm49, %v36, 0
    %53 = vmatprep.subr.bf16.mxu0 0
    %54 = vmatpush1.bf16.msra.mxu0 %v45
    %55 = vmatprep.subr.bf16.mxu0 0
    %56 = vmatpush1.bf16.msra.mxu0 %v46
    %57 = vmatprep.subr.bf16.mxu0 0
    %58 = vmatpush1.bf16.msra.mxu0 0
    %59 = vmatprep.subr.bf16.mxu0 0
    %60 = vmatpush1.bf16.msra.mxu0 0
    %61 = vmatprep.subr.bf16.mxu0 0
    %62 = vmatpush1.bf16.msra.mxu0 0
    %63 = vmatprep.subr.bf16.mxu0 0
    %64 = vmatpush1.bf16.msra.mxu0 0
    %65 = vmatprep.subr.bf16.mxu0 0
    %66 = vmatpush1.bf16.msra.mxu0 0
    %67 = vmatprep.subr.bf16.mxu0 0
    %68 = vmatpush1.bf16.msra.mxu0 0
    %69 = vmatprep.subr.bf16.mxu0 0
    %70 = vmatpush1.bf16.msra.mxu0 0
    %71 = vmatprep.subr.bf16.mxu0 0
    %72 = vmatpush1.bf16.msra.mxu0 0
    %73 = vmatprep.subr.bf16.mxu0 0
    %74 = vmatpush1.bf16.msra.mxu0 0
    %75 = vmatprep.subr.bf16.mxu0 0
    %76 = vmatpush1.bf16.msra.mxu0 0
    %77 = vmatprep.subr.bf16.mxu0 0
    %78 = vmatpush1.bf16.msra.mxu0 0
    %79 = vmatprep.subr.bf16.mxu0 0
    %80 = vmatpush1.bf16.msra.mxu0 0
    %81 = vmatprep.subr.bf16.mxu0 0
    %82 = vmatpush1.bf16.msra.mxu0 0
    %83 = vmatprep.subr.bf16.mxu0 0
    %84 = vmatpush1.bf16.msra.mxu0 0
    %85 = vmatprep.mubr.bf16.mxu0 0
    %86 = vmatmul.mubr.bf16.gmra.mrb[0].mxu0 %v51
    %v87 = vpop.f32.mrb[0].mxu0
    %v88 = vadd.f32 %v30, %v87
    %v89 = vpop.f32.mrb[0].mxu0
    %v90 = vpop.f32.mrb[0].mxu0
    %v91 = vadd.f32 %v30, %v90
    %v92 = vpop.f32.mrb[0].mxu0
    %93 = vdwg.mxu0
    %v94 = vxor.u32 %v88, 2147483648
    %v95 = vxor.u32 %v91, 2147483648
    %v96 = vmul.f32 %v94, 1.442695
    %v97 = vpow.pop %v96
    %v98 = vmul.f32 %v95, 1.442695
    %v99 = vpow.pop %v98
    %v100 = vadd.f32 %v97, 1.0
    %v101 = vadd.f32 %v99, 1.0
    %v102 = vrcp.pop %v100
    %v103 = vmul.f32 1.0, %v102
    %v104 = vrcp.pop %v101
    %v105 = vmul.f32 1.0, %v104
    %v106 = vpack.c.bf16 %v105, %v103
    %v107 = vld [vmem:[%s3] sm:$0xf]
    %v108 = vld [vmem:[%s3 + $0x4] sm:$0xf]
    %v109 = vld [vmem:[%s3 + $0x8] sm:$0xf]
    %v110 = vld [vmem:[%s3 + $0xc] sm:$0xf]
    %v111 = vld [vmem:[%s3 + $0x10] sm:$0xf]
    %v112 = vld [vmem:[%s3 + $0x14] sm:$0xf]
    %v113 = vld [vmem:[%s3 + $0x18] sm:$0xf]
    %v114 = vld [vmem:[%s3 + $0x1c] sm:$0xf]
    %v123 = vunpack.c.l.b16 %v107
    %v124 = vunpack.c.l.b16 %v108
    %v125 = vunpack.c.l.b16 %v109
    %v126 = vunpack.c.l.b16 %v110
    %v127 = vunpack.c.l.b16 %v111
    %v128 = vunpack.c.l.b16 %v112
    %v129 = vunpack.c.l.b16 %v113
    %v130 = vunpack.c.l.b16 %v114
    %v131 = vpack.c.b16 %v124, %v123
    %v132 = vpack.c.b16 %v126, %v125
    %v133 = vpack.c.b16 %v128, %v127
    %v134 = vpack.c.b16 %v130, %v129
    %vm139 = vcmask 523264
    %v141 = vsel %vm139, %v106, 0
    %143 = vmatprep.subr.bf16.mxu0 0
    %144 = vmatpush1.bf16.msra.mxu0 %v131
    %145 = vmatprep.subr.bf16.mxu0 0
    %146 = vmatpush1.bf16.msra.mxu0 %v132
    %147 = vmatprep.subr.bf16.mxu0 0
    %148 = vmatpush1.bf16.msra.mxu0 %v133
    %149 = vmatprep.subr.bf16.mxu0 0
    %150 = vmatpush1.bf16.msra.mxu0 %v134
    %151 = vmatprep.subr.bf16.mxu0 0
    %152 = vmatpush1.bf16.msra.mxu0 0
    %153 = vmatprep.subr.bf16.mxu0 0
    %154 = vmatpush1.bf16.msra.mxu0 0
    %155 = vmatprep.subr.bf16.mxu0 0
    %156 = vmatpush1.bf16.msra.mxu0 0
    %157 = vmatprep.subr.bf16.mxu0 0
    %158 = vmatpush1.bf16.msra.mxu0 0
    %159 = vmatprep.subr.bf16.mxu0 0
    %160 = vmatpush1.bf16.msra.mxu0 0
    %161 = vmatprep.subr.bf16.mxu0 0
    %162 = vmatpush1.bf16.msra.mxu0 0
    %163 = vmatprep.subr.bf16.mxu0 0
    %164 = vmatpush1.bf16.msra.mxu0 0
    %165 = vmatprep.subr.bf16.mxu0 0
    %166 = vmatpush1.bf16.msra.mxu0 0
    %167 = vmatprep.subr.bf16.mxu0 0
    %168 = vmatpush1.bf16.msra.mxu0 0
    %169 = vmatprep.subr.bf16.mxu0 0
    %170 = vmatpush1.bf16.msra.mxu0 0
    %171 = vmatprep.subr.bf16.mxu0 0
    %172 = vmatpush1.bf16.msra.mxu0 0
    %173 = vmatprep.subr.bf16.mxu0 0
    %174 = vmatpush1.bf16.msra.mxu0 0
    %175 = vmatprep.mubr.bf16.mxu0 0
    %176 = vmatmul.mubr.bf16.gmra.mrb[0].mxu0 %v141
    %v177 = vpop.f32.mrb[0].mxu0
    %v178 = vadd.f32 0.0, %v177
    %v179 = vpop.f32.mrb[0].mxu0
    %v180 = vpop.f32.mrb[0].mxu0
    %v181 = vadd.f32 0.0, %v180
    %v182 = vpop.f32.mrb[0].mxu0
    %183 = vdwg.mxu0
    %184 = vst [vmem:[#allocation2] sm:$0xff] %v178
    %185 = vst [vmem:[#allocation2 + $0x8] sm:$0xff] %v181
    // Predicated region
    $region18: #{elm_forward.1} parent=1 // pred_check
      _
    $region19: #{elm_forward.1} parent=1 // pred_check_branch
      %187 = sbr.rel (0) target = $region21
    $region20: #{elm_forward.1} parent=1 // pred_region
      %s189 = ssub.s32 256, 256
      %190 = vsyncadd [#allocation3], %s189
      %s191 = sshll.u32 [#allocation2], 4
      %s192 = int_to_ptr.vmem [resolvable:$true] %s191
      %197 = dma.vmem_to_hbm [thread:$0]  %s192, 256, %s4, [#allocation3], 128, 128, 8
    $region21: #{elm_forward.1} parent=1 // pred_fallthru
      _
    // Predicated region
    $region22: #{elm_forward.1} parent=1 // pred_check
      _
    $region23: #{elm_forward.1} parent=1 // pred_check_branch
      %199 = sbr.rel (0) target = $region25
    $region24: #{elm_forward.1} parent=1 // pred_region
      %200 = dma.done [#allocation3], 256
    $region25: #{elm_forward.1} parent=1 // pred_fallthru
      _
    %201 = vsyncpa [#allocation3], 1

</llo_original>
